<compile_context>
chip_gen: v6e
topology: v6e:2x2x1
jax: 0.10.0
libtpu: 0.0.40
codegen_flags: <defaults>
</compile_context>

<pallas_src>
from functools import partial

import jax
import jax.numpy as jnp
from jax.experimental import pallas as pl
from jax.experimental.pallas import tpu as pltpu

_NCP = 128  # class dim padded to one lane group (mem-bound: do NOT pad to 256)
_VMEM_LIMIT = 48 * 1024 * 1024  # explicit limit (v5e scoped default is 16 MiB)


# ----------------------------------------------------------------------------
# Block-size helpers (byte-budgeted; conservative for v7x's 64 MiB VMEM)
# ----------------------------------------------------------------------------
def _num_tensorcores():
    try:
        kind = jax.devices()[0].device_kind.lower()
    except Exception:
        return 1
    return 2 if "v7" in kind else 1


def _largest_divisor_multiple(total, unit, cap):
    """Largest multiple of `unit` dividing `total`, <= cap (falls back to total)."""
    if total % unit != 0 or total < unit:
        return total
    b = min(total, max(unit, cap - cap % unit))
    while total % b != 0:
        b -= unit
    return b


def _pick_rows_block(total_rows, cap, min_blocks=1):
    """Multiple-of-8 divisor of total_rows <= cap; shrinks to reach min_blocks."""
    if total_rows % 8 != 0:
        return total_rows
    nb = _largest_divisor_multiple(total_rows, 8, cap)
    while min_blocks > 1 and total_rows // nb < min_blocks and nb > 8:
        smaller = nb - 8
        while smaller >= 8 and total_rows % smaller != 0:
            smaller -= 8
        if smaller < 8:
            break
        nb = smaller
    return nb


def _pick_k_tile(d_pad, nb, budget_bytes=10 * 1024 * 1024, cap=2048):
    """K tile (multiple of 128 dividing d_pad) under a double-buffered budget."""
    per_tk = 2 * (2 * nb * 4 + _NCP * 2)  # 2 f32 activation streams + bf16 weights
    cap = min(cap, max(128, budget_bytes // per_tk))
    return _largest_divisor_multiple(d_pad, 128, cap)


# ----------------------------------------------------------------------------
# Kernels
# ----------------------------------------------------------------------------
def _affine_rows_kernel(x_ref, scale_ref, shift_ref, o_ref):
    # x_ref: (Rb, HWt), scale/shift: (Rb, 1)   ->  x * scale + shift
    o_ref[...] = x_ref[...] * scale_ref[...] + shift_ref[...]


def _argmax_epilogue(acc_ref, b_ref, labels_ref, pred_ref, match_ref,
                     num_classes):
    logits = acc_ref[...] + b_ref[...]                       # (Nb, 128) f32
    ncp = logits.shape[-1]
    ids = jax.lax.broadcasted_iota(jnp.int32, logits.shape, 1)
    # Mask padded class columns so they can never win the argmax.
    logits = jnp.where(ids < num_classes, logits, -jnp.inf)
    max_val = jnp.max(logits, axis=-1, keepdims=True)
    # torch .max returns the first maximal index -> min over matching ids.
    cand = jnp.where(logits == max_val, ids, ncp)
    pred = jnp.min(cand, axis=-1, keepdims=True).astype(jnp.int32)
    pred_ref[...] = pred
    match_ref[...] = (pred == labels_ref[...]).astype(jnp.float32)


def _clean_pred_kernel(x_ref, w_ref, b_ref, labels_ref,
                       pred_ref, match_ref, acc_ref, *, num_classes):
    # grid = (row_blocks, k_blocks); K is the reduction axis ("arbitrary").
    # Activations arrive in f32 and are cast to bf16 in-register (no XLA pass).
    k = pl.program_id(1)

    @pl.when(k == 0)
    def _():
        acc_ref[...] = jnp.zeros_like(acc_ref)

    acc_ref[...] += jnp.dot(x_ref[...].astype(jnp.bfloat16), w_ref[...],
                            preferred_element_type=jnp.float32)

    @pl.when(k == pl.num_programs(1) - 1)
    def _():
        _argmax_epilogue(acc_ref, b_ref, labels_ref, pred_ref, match_ref,
                         num_classes)


def _row_l2_kernel(x_ref, o_ref, acc_ref, *, lanes_per_tile):
    # Per-row L2 norm, lane-wide (nb,128) accumulator, one XLU reduce at the end.
    k = pl.program_id(1)

    @pl.when(k == 0)
    def _():
        acc_ref[...] = jnp.zeros_like(acc_ref)

    sq = x_ref[...].astype(jnp.float32)
    sq = sq * sq
    partial_ = sq[:, 0:128]
    for j in range(1, lanes_per_tile):
        partial_ = partial_ + sq[:, j * 128:(j + 1) * 128]
    acc_ref[...] += partial_

    @pl.when(k == pl.num_programs(1) - 1)
    def _():
        o_ref[...] = jnp.sqrt(jnp.sum(acc_ref[...], axis=-1, keepdims=True))


def _adv_eval_kernel(xun_ref, delta_ref, scale_ref, w_ref, b_ref, labels_ref,
                     pred_ref, match_ref, norm_ref, acc_ref, nrm_ref,
                     *, num_classes, lanes_per_tile):
    # Fused adversarial evaluation for stacked epsilons:
    #   x_adv = clip(x_un + scale*delta, 0, 1)       (never written to HBM)
    #   logits += x_adv(bf16) @ w_fold(bf16)          (normalization folded)
    #   diff-norm accumulator += sum((x_adv-x_un)^2)  (lane-wide)
    # Epilogue (last K tile): argmax, label match, sqrt(norm).
    k = pl.program_id(1)

    @pl.when(k == 0)
    def _():
        acc_ref[...] = jnp.zeros_like(acc_ref)
        nrm_ref[...] = jnp.zeros_like(nrm_ref)

    xun = xun_ref[...]
    x_adv = jnp.clip(xun + scale_ref[...] * delta_ref[...], 0.0, 1.0)

    acc_ref[...] += jnp.dot(x_adv.astype(jnp.bfloat16), w_ref[...],
                            preferred_element_type=jnp.float32)

    diff = x_adv - xun
    sq = diff * diff
    partial_ = sq[:, 0:128]
    for j in range(1, lanes_per_tile):
        partial_ = partial_ + sq[:, j * 128:(j + 1) * 128]
    nrm_ref[...] += partial_

    @pl.when(k == pl.num_programs(1) - 1)
    def _():
        _argmax_epilogue(acc_ref, b_ref, labels_ref, pred_ref, match_ref,
                         num_classes)
        norm_ref[...] = jnp.sqrt(jnp.sum(nrm_ref[...], axis=-1, keepdims=True))


# ----------------------------------------------------------------------------
# Wrappers
# ----------------------------------------------------------------------------
def pad_classifier(w_cls, b_cls, d_pad):
    d, ncls = w_cls.shape
    w = jnp.pad(w_cls.astype(jnp.float32), ((0, d_pad - d), (0, _NCP - ncls)))
    b = jnp.pad(b_cls.reshape(1, -1).astype(jnp.float32),
                ((0, 0), (0, _NCP - ncls)))
    return w, b


def remove_normalization(x_nchw, mean, std):
    """x * std + mean, as (N*C, HW) rows tiled on BOTH axes (byte-budgeted)."""
    n, c, h, w = x_nchw.shape
    hw = h * w
    rows = n * c
    x2 = x_nchw.reshape(rows, hw)
    scale = jnp.tile(std.reshape(c, 1), (n, 1)).astype(x2.dtype)   # (rows, 1)
    shift = jnp.tile(mean.reshape(c, 1), (n, 1)).astype(x2.dtype)  # (rows, 1)

    hwt = _largest_divisor_multiple(hw, 128, 2048) if hw % 128 == 0 else hw
    # ~8 MiB budget for double-buffered f32 input + output tiles
    rb_cap = max(8, (8 * 1024 * 1024) // (4 * 4 * hwt))
    min_blocks = 2 if (_num_tensorcores() > 1 and rows >= 16) else 1
    rb = _pick_rows_block(rows, rb_cap, min_blocks=min_blocks)

    out = pl.pallas_call(
        _affine_rows_kernel,
        out_shape=jax.ShapeDtypeStruct((rows, hw), x2.dtype),
        grid=(rows // rb, hw // hwt),
        in_specs=[
            pl.BlockSpec((rb, hwt), lambda i, j: (i, j)),
            pl.BlockSpec((rb, 1), lambda i, j: (i, 0)),
            pl.BlockSpec((rb, 1), lambda i, j: (i, 0)),
        ],
        out_specs=pl.BlockSpec((rb, hwt), lambda i, j: (i, j)),
        compiler_params=pltpu.CompilerParams(
            dimension_semantics=("parallel", "parallel"),
            vmem_limit_bytes=_VMEM_LIMIT),
    )(x2, scale, shift)
    return out.reshape(n, c, h, w)


def clean_pred_match(x_flat, w_bf16, b_f32, labels_i, num_classes):
    """Clean-pass matmul (K-tiled, bf16 MXU, f32 acc) fused with argmax+match."""
    n, d_pad = x_flat.shape
    min_blocks = 2 if (_num_tensorcores() > 1 and n >= 16) else 1
    nb = _pick_rows_block(n, 256, min_blocks=min_blocks)
    tk = _pick_k_tile(d_pad, nb)

    kernel = partial(_clean_pred_kernel, num_classes=num_classes)
    pred, match = pl.pallas_call(
        kernel,
        out_shape=(jax.ShapeDtypeStruct((n, 1), jnp.int32),
                   jax.ShapeDtypeStruct((n, 1), jnp.float32)),
        grid=(n // nb, d_pad // tk),
        in_specs=[
            pl.BlockSpec((nb, tk), lambda i, k: (i, k)),
            pl.BlockSpec((tk, _NCP), lambda i, k: (k, 0)),
            pl.BlockSpec((1, _NCP), lambda i, k: (0, 0)),
            pl.BlockSpec((nb, 1), lambda i, k: (i, 0)),
        ],
        out_specs=(pl.BlockSpec((nb, 1), lambda i, k: (i, 0)),
                   pl.BlockSpec((nb, 1), lambda i, k: (i, 0))),
        scratch_shapes=[pltpu.VMEM((nb, _NCP), jnp.float32)],
        compiler_params=pltpu.CompilerParams(
            dimension_semantics=("parallel", "arbitrary"),
            vmem_limit_bytes=_VMEM_LIMIT),
    )(x_flat, w_bf16, b_f32, labels_i)
    return pred[:, 0], match[:, 0]


def row_l2_norms(x_flat):
    """Per-row L2 norm, K-tiled with a lane-wide f32 accumulator."""
    m, d_pad = x_flat.shape
    nb = _pick_rows_block(m, 512)
    tk = _pick_k_tile(d_pad, nb)
    kernel = partial(_row_l2_kernel, lanes_per_tile=tk // 128)
    out = pl.pallas_call(
        kernel,
        out_shape=jax.ShapeDtypeStruct((m, 1), jnp.float32),
        grid=(m // nb, d_pad // tk),
        in_specs=[pl.BlockSpec((nb, tk), lambda i, k: (i, k))],
        out_specs=pl.BlockSpec((nb, 1), lambda i, k: (i, 0)),
        scratch_shapes=[pltpu.VMEM((nb, 128), jnp.float32)],
        compiler_params=pltpu.CompilerParams(
            dimension_semantics=("parallel", "arbitrary"),
            vmem_limit_bytes=_VMEM_LIMIT),
    )(x_flat)
    return out[:, 0]


def adv_eval_stacked(x_un_flat, deltas_flat, scales, w_fold_bf16, b_fold_f32,
                     labels_i, num_classes, num_eps):
    """All epsilons in one call: fused x_adv + matmul + argmax + diff-norm."""
    n, d_pad = x_un_flat.shape
    total = num_eps * n

    min_blocks = 2 if (_num_tensorcores() > 1 and total >= 16) else 1
    if n % 8 == 0:
        nb = _pick_rows_block(n, 256)
        # v7x: make sure the stacked grid has >= min_blocks row blocks.
        while min_blocks > 1 and total // nb < min_blocks and nb > 8:
            smaller = nb - 8
            while smaller >= 8 and n % smaller != 0:
                smaller -= 8
            if smaller < 8:
                break
            nb = smaller
        bpe = n // nb
        x_un_in, labels_in = x_un_flat, labels_i
    else:
        # TODO(synk): ragged batch; materialize per-epsilon copies (rare path).
        x_un_in = jnp.tile(x_un_flat, (num_eps, 1))
        labels_in = jnp.tile(labels_i, (num_eps, 1))
        nb = total
        bpe = 1

    tk = _pick_k_tile(d_pad, nb)

    if x_un_in.shape[0] == n and bpe > 1:
        xun_map = lambda i, k: (i % bpe, k)
        lbl_map = lambda i, k: (i % bpe, 0)
    elif x_un_in.shape[0] == n:
        xun_map = lambda i, k: (0, k)
        lbl_map = lambda i, k: (0, 0)
    else:
        xun_map = lambda i, k: (i, k)
        lbl_map = lambda i, k: (i, 0)

    kernel = partial(_adv_eval_kernel, num_classes=num_classes,
                     lanes_per_tile=tk // 128)
    pred, match, norms = pl.pallas_call(
        kernel,
        out_shape=(jax.ShapeDtypeStruct((total, 1), jnp.int32),
                   jax.ShapeDtypeStruct((total, 1), jnp.float32),
                   jax.ShapeDtypeStruct((total, 1), jnp.float32)),
        grid=(total // nb, d_pad // tk),
        in_specs=[
            pl.BlockSpec((nb, tk), xun_map),
            pl.BlockSpec((nb, tk), lambda i, k: (i, k)),
            pl.BlockSpec((nb, 1), lambda i, k: (i, 0)),
            pl.BlockSpec((tk, _NCP), lambda i, k: (k, 0)),
            pl.BlockSpec((1, _NCP), lambda i, k: (0, 0)),
            pl.BlockSpec((nb, 1), lbl_map),
        ],
        out_specs=(pl.BlockSpec((nb, 1), lambda i, k: (i, 0)),
                   pl.BlockSpec((nb, 1), lambda i, k: (i, 0)),
                   pl.BlockSpec((nb, 1), lambda i, k: (i, 0))),
        scratch_shapes=[pltpu.VMEM((nb, _NCP), jnp.float32),
                        pltpu.VMEM((nb, 128), jnp.float32)],
        compiler_params=pltpu.CompilerParams(
            dimension_semantics=("parallel", "arbitrary"),
            vmem_limit_bytes=_VMEM_LIMIT),
    )(x_un_in, deltas_flat, scales, w_fold_bf16, b_fold_f32, labels_in)
    return (pred.reshape(num_eps, n), match.reshape(num_eps, n),
            norms.reshape(num_eps, n))


# ----------------------------------------------------------------------------
# AutoAttackAccuracy forward pipeline (JAX/Pallas version)
# ----------------------------------------------------------------------------
def auto_attack_accuracy_forward(x, labels, w_cls, b_cls,
                                 data_mean, data_std, epsilons, key):
    """Reproduces AutoAttackAccuracy.forward tallying for one batch.

    `x` is in normalized (model-input) space, NCHW. Everything stays on
    device: instead of boolean-indexing the correct samples (host sync), the
    per-epsilon tallies are masked by the `correct` flags, which yields the
    same means as the torch reference for a single batch.
    """
    n, c, h, w = x.shape
    d = c * h * w
    num_classes = w_cls.shape[1]
    num_eps = len(epsilons)

    d_pad = -(-d // 128) * 128  # lane-align K; no-op when d % 128 == 0

    # Pad class dim to 128 lanes once; keep weights as the only pre-cast bf16.
    w_pad_f32, b_pad = pad_classifier(w_cls, b_cls, d_pad)

    # Fold the per-channel normalization into the classifier for the
    # adversarial (unnormalized-input) path:  logits = x_un @ w_fold + b_fold.
    inv_std = (1.0 / data_std).astype(jnp.float32)
    scale_feat = jnp.pad(jnp.repeat(inv_std, h * w), (0, d_pad - d))
    shift_feat = jnp.pad(jnp.repeat(data_mean.astype(jnp.float32) * inv_std,
                                    h * w), (0, d_pad - d))
    w_fold_f32 = w_pad_f32 * scale_feat[:, None]
    b_fold = b_pad - shift_feat[None, :] @ w_pad_f32

    w_pad_bf = w_pad_f32.astype(jnp.bfloat16)
    w_fold_bf = w_fold_f32.astype(jnp.bfloat16)

    labels_i = labels.reshape(n, 1).astype(jnp.int32)

    def _flat_pad(a):
        a2 = a.reshape(a.shape[0], -1)
        if d_pad > d:
            a2 = jnp.pad(a2, ((0, 0), (0, d_pad - d)))
        return a2.astype(jnp.float32)

    x_flat = _flat_pad(x)

    # _get_correct_preds: clean forward (normalized input, un-folded weights),
    # argmax + label comparison fused in-kernel.
    _, correct = clean_pred_match(x_flat, w_pad_bf, b_pad, labels_i,
                                  num_classes)

    # _remove_normalization before handing images to the adversary.
    x_unnorm = remove_normalization(x, data_mean, data_std)
    x_un_flat = _flat_pad(x_unnorm)

    acc = jnp.mean(correct)
    n_correct = jnp.sum(correct)
    denom = jnp.maximum(n_correct, 1.0)   # torch would NaN on an empty batch

    # TODO(synk): the AutoAttack adversary itself (APGD/FAB/Square) has no
    # clean Pallas equivalent; a synthetic L2-ball perturbation stands in
    # for adversary.run_standard_evaluation.
    keys = jax.random.split(key, num_eps)
    deltas = jnp.stack([jax.random.normal(keys[i], (n, d_pad), jnp.float32)
                        for i in range(num_eps)], axis=0)      # (E, n, d_pad)
    if d_pad > d:
        feat_ids = jnp.arange(d_pad)
        deltas = jnp.where(feat_ids[None, None, :] < d, deltas, 0.0)
    deltas_flat = deltas.reshape(num_eps * n, d_pad)

    # One K-tiled pass over delta for the per-sample norm; the scale is tiny.
    delta_norms = row_l2_norms(deltas_flat)                        # (E*n,)
    eps_vec = jnp.repeat(jnp.asarray(epsilons, jnp.float32), n)    # (E*n,)
    scales = (eps_vec / (delta_norms + 1e-12)).reshape(-1, 1)

    # Fused per-epsilon evaluation in a single stacked call: x_adv
    # construction + folded-normalization matmul + argmax/match + diff-norm.
    _, adv_match, adv_norms = adv_eval_stacked(
        x_un_flat, deltas_flat, scales, w_fold_bf, b_fold, labels_i,
        num_classes, num_eps)

    results = {}
    all_norms_by_eps = {}
    for e_i, eps in enumerate(epsilons):
        success = 1.0 - adv_match[e_i]
        succ_mean = jnp.sum(success * correct) / denom
        success_rate = 1.0 - succ_mean
        robust_acc = acc * (1.0 - succ_mean)
        results['success_rate_{:.3f}'.format(eps)] = success_rate
        results['robust_acc_{:.3f}'.format(eps)] = robust_acc * 100.0
        # torch only returns norms for inputs[correct_preds]; we mask by the
        # `correct` flags on device instead of host-side boolean indexing.
        all_norms_by_eps[eps] = adv_norms[e_i] * correct

    return results, all_norms_by_eps, correct


# ----------------------------------------------------------------------------
if __name__ == "__main__":
    key = jax.random.PRNGKey(0)
    N, C, H, W = 8, 4, 16, 16
    NUM_CLASSES = 10
    D = C * H * W
    epsilons = [0.25, 0.5]

    k_x, k_w, k_lbl, k_atk = jax.random.split(key, 4)

    # "dataset" batch in normalized (model-input) space
    x = jax.random.uniform(k_x, (N, C, H, W), jnp.float32)

    # deterministic synthetic "model": a linear classifier over flattened pixels
    w_cls = jax.random.normal(k_w, (D, NUM_CLASSES), jnp.float32) * 0.02
    b_cls = jnp.zeros((1, NUM_CLASSES), jnp.float32)

    data_mean = jnp.array([0.485, 0.456, 0.406, 0.5], jnp.float32)
    data_std = jnp.array([0.229, 0.224, 0.225, 0.25], jnp.float32)

    # labels: half taken from clean predictions (guarantees a non-empty
    # "correct" set), half random
    D_PAD = -(-D // 128) * 128
    w_pad0_f32, b_pad0 = pad_classifier(w_cls, b_cls, D_PAD)
    x_flat0 = x.reshape(N, D).astype(jnp.float32)
    if D_PAD > D:
        x_flat0 = jnp.pad(x_flat0, ((0, 0), (0, D_PAD - D)))
    clean_pred, _ = clean_pred_match(
        x_flat0, w_pad0_f32.astype(jnp.bfloat16), b_pad0,
        jnp.zeros((N, 1), jnp.int32), NUM_CLASSES)
    rand_lbl = jax.random.randint(k_lbl, (N,), 0, NUM_CLASSES, jnp.int32)
    labels = jnp.where(jnp.arange(N) < N // 2, clean_pred,
                       rand_lbl).astype(jnp.int32)

    results, norms, correct = auto_attack_accuracy_forward(
        x, labels, w_cls, b_cls, data_mean, data_std, epsilons, k_atk)

    for v in results.values():
        jax.block_until_ready(v)
    for v in norms.values():
        jax.block_until_ready(v)
    jax.block_until_ready(correct)

    print("KERNEL_OK")
</pallas_src>

<mosaic_0001>
module attributes {stable_mosaic.version = 11 : i64} {
  func.func @_clean_pred_kernel(%arg0: i32, %arg1: i32, %arg2: memref<8x1024xf32, #tpu.memory_space<vmem>>, %arg3: memref<1024x128xbf16, #tpu.memory_space<vmem>>, %arg4: memref<1x128xf32, #tpu.memory_space<vmem>>, %arg5: memref<8x1xi32, #tpu.memory_space<vmem>>, %arg6: memref<8x1xi32, #tpu.memory_space<vmem>>, %arg7: memref<8x1xf32, #tpu.memory_space<vmem>>, %arg8: memref<8x128xf32, #tpu.memory_space<vmem>>) attributes {dimension_semantics = [#tpu.dimension_semantics<parallel>, #tpu.dimension_semantics<arbitrary>], iteration_bounds = array<i64: 1, 1>, scalar_prefetch = 0 : i64, scratch_operands = 1 : i64, tpu.core_type = #tpu.core_type<tc>, window_params = [{transform_indices = @transform_0, window_bounds = array<i64: 8, 1024>}, {transform_indices = @transform_1, window_bounds = array<i64: 1024, 128>}, {pipeline_mode = #tpu.pipeline_mode<synchronous>, transform_indices = @transform_2, window_bounds = array<i64: 1, 128>}, {transform_indices = @transform_3, window_bounds = array<i64: 8, 1>}, {transform_indices = @transform_4, window_bounds = array<i64: 8, 1>}, {transform_indices = @transform_5, window_bounds = array<i64: 8, 1>}]} {
    %c0_i32 = arith.constant 0 : i32
    %0 = arith.cmpi eq, %arg1, %c0_i32 : i32
    %1 = arith.extui %0 : i1 to i32
    %c0_i32_0 = arith.constant 0 : i32
    %2 = arith.cmpi ne, %1, %c0_i32_0 : i32
    scf.if %2 {
      %cst_10 = arith.constant 0.000000e+00 : f32
      %13 = vector.broadcast %cst_10 : f32 to vector<8x128xf32>
      %c0_11 = arith.constant 0 : index
      %c0_12 = arith.constant 0 : index
      %14 = vector.load %arg8[%c0_11, %c0_12] : memref<8x128xf32, #tpu.memory_space<vmem>>, vector<8x128xf32>
      tpu.vector_store %arg8[%c0_11, %c0_12], %13 {strides = array<i32>} : memref<8x128xf32, #tpu.memory_space<vmem>>, vector<8x128xf32>,
    } else {
    }
    %c0 = arith.constant 0 : index
    %c0_1 = arith.constant 0 : index
    %3 = vector.load %arg8[%c0, %c0_1] : memref<8x128xf32, #tpu.memory_space<vmem>>, vector<8x128xf32>
    %c0_2 = arith.constant 0 : index
    %c0_3 = arith.constant 0 : index
    %4 = vector.load %arg2[%c0_2, %c0_3] : memref<8x1024xf32, #tpu.memory_space<vmem>>, vector<8x1024xf32>
    %5 = arith.truncf %4 : vector<8x1024xf32> to vector<8x1024xbf16>
    %c0_4 = arith.constant 0 : index
    %c0_5 = arith.constant 0 : index
    %6 = vector.load %arg3[%c0_4, %c0_5] : memref<1024x128xbf16, #tpu.memory_space<vmem>>, vector<1024x128xbf16>
    %cst = arith.constant dense<0.000000e+00> : vector<8x128xf32>
    %7 = tpu.matmul %5, %6, %cst {dimension_numbers = #tpu.dot_dimension_numbers<[1], [0], [0], [1], [0, 0, 1, 1], [], []>} : vector<8x1024xbf16>, vector<1024x128xbf16>, vector<8x128xf32> -> vector<8x128xf32>
    %8 = arith.addf %3, %7 : vector<8x128xf32>
    %c0_6 = arith.constant 0 : index
    %c0_7 = arith.constant 0 : index
    %9 = vector.load %arg8[%c0_6, %c0_7] : memref<8x128xf32, #tpu.memory_space<vmem>>, vector<8x128xf32>
    tpu.vector_store %arg8[%c0_6, %c0_7], %8 {strides = array<i32>} : memref<8x128xf32, #tpu.memory_space<vmem>>, vector<8x128xf32>,
    %c0_i32_8 = arith.constant 0 : i32
    %10 = arith.cmpi eq, %arg1, %c0_i32_8 : i32
    %11 = arith.extui %10 : i1 to i32
    %c0_i32_9 = arith.constant 0 : i32
    %12 = arith.cmpi ne, %11, %c0_i32_9 : i32
    scf.if %12 {
      %c0_10 = arith.constant 0 : index
      %c0_11 = arith.constant 0 : index
      %13 = vector.load %arg8[%c0_10, %c0_11] : memref<8x128xf32, #tpu.memory_space<vmem>>, vector<8x128xf32>
      %c0_12 = arith.constant 0 : index
      %c0_13 = arith.constant 0 : index
      %14 = vector.load %arg4[%c0_12, %c0_13] : memref<1x128xf32, #tpu.memory_space<vmem>>, vector<1x128xf32>
      %15 = vector.broadcast %14 : vector<1x128xf32> to vector<8x128xf32>
      %16 = arith.addf %13, %15 : vector<8x128xf32>
      %17 = tpu.iota {dimensions = array<i32: 1>} : vector<8x128xi32>
      %c10_i32 = arith.constant 10 : i32
      %18 = vector.broadcast %c10_i32 : i32 to vector<8x128xi32>
      %19 = arith.cmpi slt, %17, %18 : vector<8x128xi32>
      %cst_14 = arith.constant 0xFF800000 : f32
      %20 = vector.broadcast %cst_14 : f32 to vector<8x128xf32>
      %21 = arith.select %19, %16, %20 : vector<8x128xi1>, vector<8x128xf32>
      %cst_15 = arith.constant dense<0xFF800000> : vector<8xf32>
      %22 = vector.multi_reduction <maximumf>, %21, %cst_15 [1] : vector<8x128xf32> to vector<8xf32>
      %23 = vector.shape_cast %22 : vector<8xf32> to vector<8x1xf32>
      %24 = vector.broadcast %23 : vector<8x1xf32> to vector<8x128xf32>
      %25 = arith.cmpf oeq, %21, %24 : vector<8x128xf32>
      %c128_i32 = arith.constant 128 : i32
      %26 = vector.broadcast %c128_i32 : i32 to vector<8x128xi32>
      %27 = arith.select %25, %17, %26 : vector<8x128xi1>, vector<8x128xi32>
      %cst_16 = arith.constant dense<2147483647> : vector<8xi32>
      %28 = vector.multi_reduction <minsi>, %27, %cst_16 [1] : vector<8x128xi32> to vector<8xi32>
      %29 = vector.shape_cast %28 : vector<8xi32> to vector<8x1xi32>
      %c0_17 = arith.constant 0 : index
      %c0_18 = arith.constant 0 : index
      %30 = vector.load %arg6[%c0_17, %c0_18] : memref<8x1xi32, #tpu.memory_space<vmem>>, vector<8x1xi32>
      tpu.vector_store %arg6[%c0_17, %c0_18], %29 {strides = array<i32>} : memref<8x1xi32, #tpu.memory_space<vmem>>, vector<8x1xi32>,
      %c0_19 = arith.constant 0 : index
      %c0_20 = arith.constant 0 : index
      %31 = vector.load %arg5[%c0_19, %c0_20] : memref<8x1xi32, #tpu.memory_space<vmem>>, vector<8x1xi32>
      %32 = arith.cmpi eq, %29, %31 : vector<8x1xi32>
      %33 = arith.extui %32 : vector<8x1xi1> to vector<8x1xi32>
      %34 = arith.sitofp %33 : vector<8x1xi32> to vector<8x1xf32>
      %c0_21 = arith.constant 0 : index
      %c0_22 = arith.constant 0 : index
      %35 = vector.load %arg7[%c0_21, %c0_22] : memref<8x1xf32, #tpu.memory_space<vmem>>, vector<8x1xf32>
      tpu.vector_store %arg7[%c0_21, %c0_22], %34 {strides = array<i32>} : memref<8x1xf32, #tpu.memory_space<vmem>>, vector<8x1xf32>,
    } else {
    }
    return
  }
  func.func @transform_0(%arg0: i32, %arg1: i32) -> (i32, i32) {
    %c0_i32 = arith.constant 0 : i32
    return %arg0, %arg1 : i32, i32
  }
  func.func @transform_1(%arg0: i32, %arg1: i32) -> (i32, i32) {
    %c0_i32 = arith.constant 0 : i32
    %c0_i32_0 = arith.constant 0 : i32
    return %arg1, %c0_i32 : i32, i32
  }
  func.func @transform_2(%arg0: i32, %arg1: i32) -> (i32, i32) {
    %c0_i32 = arith.constant 0 : i32
    %c0_i32_0 = arith.constant 0 : i32
    %c0_i32_1 = arith.constant 0 : i32
    return %c0_i32, %c0_i32_0 : i32, i32
  }
  func.func @transform_3(%arg0: i32, %arg1: i32) -> (i32, i32) {
    %c0_i32 = arith.constant 0 : i32
    %c0_i32_0 = arith.constant 0 : i32
    return %arg0, %c0_i32 : i32, i32
  }
  func.func @transform_4(%arg0: i32, %arg1: i32) -> (i32, i32) {
    %c0_i32 = arith.constant 0 : i32
    %c0_i32_0 = arith.constant 0 : i32
    return %arg0, %c0_i32 : i32, i32
  }
  func.func @transform_5(%arg0: i32, %arg1: i32) -> (i32, i32) {
    %c0_i32 = arith.constant 0 : i32
    %c0_i32_0 = arith.constant 0 : i32
    return %arg0, %c0_i32 : i32, i32
  }
}

</mosaic_0001>

<llo_original>
// kernel: tpu_custom_call.1
$region0: #{tpu_custom_call.1}
  #allocation0 [shape = 'u32[]', space=smem, size = 0x4, offset = 0x4, fixed_abs, tag = 'smem constant byte address 0x4 - core index']
  #allocation1 [shape = 'u32[144,128]{1,0:T(1,128)}', space=vmem, size = 0x12000, scoped, tag = 'internal scratch']
  #allocation2 [shape = 'f32[8,128]{1,0:T(8,128)}', space=vmem, size = 0x1000, scoped, tag = 'scratch operand']
  %s0 = inlined_call_operand.hbm [shape: f32[8,1024], index: 0, kind: input, shape index: {}]
  %s1 = inlined_call_operand.hbm [shape: bf16[1024,128], index: 1, kind: input, shape index: {}]
  %s2 = inlined_call_operand.vmem [shape: f32[1,128], index: 2, kind: input, shape index: {}]
  %s3 = inlined_call_operand.vmem [shape: s32[8,1], index: 3, kind: input, shape index: {}]
  %s4 = inlined_call_operand.vmem [shape: s32[8,1], index: 4, kind: output, shape index: {0}]
  %s5 = inlined_call_operand.vmem [shape: f32[8,1], index: 5, kind: output, shape index: {1}]
  %6 = xla_tuple %s4, %s5
  %s7 = sld [smem:[#allocation0]]
  $region50: #{tpu_custom_call.1} parent=0
    _
  %s9 = ssub.s32 1, %s7
  %s10 = scalar_select 0, %s9, %s7
  $region1: #{tpu_custom_call.1} parent=0
    #allocation3 [shape = 'u8[32768]{0}', space=vmem, size = 0x8000, scoped, tag = 'input window, operand 0, single buffered']
    #allocation4 [shape = 's32[1]{0}', space=sflag, size = 0x4, scoped, tag = 'scoped memory for tpu_custom_call.1']
    #allocation5 [shape = 'u8[262144]{0}', space=vmem, size = 0x40000, scoped, tag = 'input window, operand 1, single buffered']
    #allocation6 [shape = 's32[1]{0}', space=sflag, size = 0x4, scoped, tag = 'scoped memory for tpu_custom_call.1']
    %11 = vsyncpa [#allocation4], 0
    %12 = vsyncpa [#allocation6], 0
    // Predicated region
    $region2: #{tpu_custom_call.1} parent=1 // pred_check
      _
    $region3: #{tpu_custom_call.1} parent=1 // pred_check_branch
      %14 = sbr.rel (0) target = $region5
    $region4: #{tpu_custom_call.1} parent=1 // pred_region
      %s16 = ssub.s32 1024, 1024
      %17 = vsyncadd [#allocation4], %s16
      %s19 = sshll.u32 [#allocation3], 4
      %s20 = int_to_ptr.vmem [resolvable:$true] %s19
      %22 = dma.hbm_to_vmem [thread:$0]  %s0, 1024, %s20, [#allocation4]
    $region5: #{tpu_custom_call.1} parent=1 // pred_fallthru
      _
    // Predicated region
    $region6: #{tpu_custom_call.1} parent=1 // pred_check
      _
    $region7: #{tpu_custom_call.1} parent=1 // pred_check_branch
      %24 = sbr.rel (0) target = $region9
    $region8: #{tpu_custom_call.1} parent=1 // pred_region
      %s26 = ssub.s32 8192, 8192
      %27 = vsyncadd [#allocation6], %s26
      %s28 = sshll.u32 [#allocation5], 4
      %s29 = int_to_ptr.vmem [resolvable:$true] %s28
      %34 = dma.hbm_to_vmem [thread:$0]  %s1, 8192, %s29, [#allocation6], 64, 64, 4
    $region9: #{tpu_custom_call.1} parent=1 // pred_fallthru
      _
    // Predicated region
    $region10: #{tpu_custom_call.1} parent=1 // pred_check
      _
    $region11: #{tpu_custom_call.1} parent=1 // pred_check_branch
      %36 = sbr.rel (0) target = $region13
    $region12: #{tpu_custom_call.1} parent=1 // pred_region
      _
    $region13: #{tpu_custom_call.1} parent=1 // pred_fallthru
      _
    // Predicated region
    $region14: #{tpu_custom_call.1} parent=1 // pred_check
      _
    $region15: #{tpu_custom_call.1} parent=1 // pred_check_branch
      %38 = sbr.rel (0) target = $region17
    $region16: #{tpu_custom_call.1} parent=1 // pred_region
      _
    $region17: #{tpu_custom_call.1} parent=1 // pred_fallthru
      _
    // Predicated region
    $region18: #{tpu_custom_call.1} parent=1 // pred_check
      _
    $region19: #{tpu_custom_call.1} parent=1 // pred_check_branch
      %40 = sbr.rel (0) target = $region21
    $region20: #{tpu_custom_call.1} parent=1 // pred_region
      %41 = dma.done [#allocation4], 1024
    $region21: #{tpu_custom_call.1} parent=1 // pred_fallthru
      _
    // Predicated region
    $region22: #{tpu_custom_call.1} parent=1 // pred_check
      _
    $region23: #{tpu_custom_call.1} parent=1 // pred_check_branch
      %43 = sbr.rel (0) target = $region25
    $region24: #{tpu_custom_call.1} parent=1 // pred_region
      %44 = dma.done [#allocation6], 8192
    $region25: #{tpu_custom_call.1} parent=1 // pred_fallthru
      _
    %p46 = scmp.eq.s32.totalorder 0, 0
    // Predicated region
    $region26: #{tpu_custom_call.1} parent=1 // pred_check
      %p47 = pneg %p46
    $region27: #{tpu_custom_call.1} parent=1 // pred_check_branch
      %49 = sbr.rel (%p47) target = $region29
    $region28: #{tpu_custom_call.1} parent=1 // pred_region
      %50 = vst [vmem:[#allocation2] sm:$0xff] 0.0
    $region29: #{tpu_custom_call.1} parent=1 // pred_fallthru
      _
    %v51 = vld [vmem:[#allocation2] sm:$0xff]
    %v52 = vld [vmem:[#allocation3] sm:$0xff]
    %v53 = vld [vmem:[#allocation3 + $0x8] sm:$0xff]
    %v54 = vld [vmem:[#allocation3 + $0x10] sm:$0xff]
    %v55 = vld [vmem:[#allocation3 + $0x18] sm:$0xff]
    %v56 = vld [vmem:[#allocation3 + $0x20] sm:$0xff]
    %v57 = vld [vmem:[#allocation3 + $0x28] sm:$0xff]
    %v58 = vld [vmem:[#allocation3 + $0x30] sm:$0xff]
    %v59 = vld [vmem:[#allocation3 + $0x38] sm:$0xff]
    %v60 = vpack.c.bf16 %v52, %v52
    %v61 = vpack.c.bf16 %v53, %v53
    %v62 = vpack.c.bf16 %v54, %v54
    %v63 = vpack.c.bf16 %v55, %v55
    %v64 = vpack.c.bf16 %v56, %v56
    %v65 = vpack.c.bf16 %v57, %v57
    %v66 = vpack.c.bf16 %v58, %v58
    %v67 = vpack.c.bf16 %v59, %v59
    %v68 = vld [vmem:[#allocation5] sm:$0xf]
    %v69 = vld [vmem:[#allocation5 + $0x4] sm:$0xf]
    %v70 = vld [vmem:[#allocation5 + $0x8] sm:$0xf]
    %v71 = vld [vmem:[#allocation5 + $0xc] sm:$0xf]
    %v72 = vld [vmem:[#allocation5 + $0x10] sm:$0xf]
    %v73 = vld [vmem:[#allocation5 + $0x14] sm:$0xf]
    %v74 = vld [vmem:[#allocation5 + $0x18] sm:$0xf]
    %v75 = vld [vmem:[#allocation5 + $0x1c] sm:$0xf]
    %v76 = vld [vmem:[#allocation5 + $0x20] sm:$0xf]
    %v77 = vld [vmem:[#allocation5 + $0x24] sm:$0xf]
    %v78 = vld [vmem:[#allocation5 + $0x28] sm:$0xf]
    %v79 = vld [vmem:[#allocation5 + $0x2c] sm:$0xf]
    %v80 = vld [vmem:[#allocation5 + $0x30] sm:$0xf]
    %v81 = vld [vmem:[#allocation5 + $0x34] sm:$0xf]
    %v82 = vld [vmem:[#allocation5 + $0x38] sm:$0xf]
    %v83 = vld [vmem:[#allocation5 + $0x3c] sm:$0xf]
    %v84 = vld [vmem:[#allocation5 + $0x40] sm:$0xf]
    %v85 = vld [vmem:[#allocation5 + $0x44] sm:$0xf]
    %v86 = vld [vmem:[#allocation5 + $0x48] sm:$0xf]
    %v87 = vld [vmem:[#allocation5 + $0x4c] sm:$0xf]
    %v88 = vld [vmem:[#allocation5 + $0x50] sm:$0xf]
    %v89 = vld [vmem:[#allocation5 + $0x54] sm:$0xf]
    %v90 = vld [vmem:[#allocation5 + $0x58] sm:$0xf]
    %v91 = vld [vmem:[#allocation5 + $0x5c] sm:$0xf]
    %v92 = vld [vmem:[#allocation5 + $0x60] sm:$0xf]
    %v93 = vld [vmem:[#allocation5 + $0x64] sm:$0xf]
    %v94 = vld [vmem:[#allocation5 + $0x68] sm:$0xf]
    %v95 = vld [vmem:[#allocation5 + $0x6c] sm:$0xf]
    %v96 = vld [vmem:[#allocation5 + $0x70] sm:$0xf]
    %v97 = vld [vmem:[#allocation5 + $0x74] sm:$0xf]
    %v98 = vld [vmem:[#allocation5 + $0x78] sm:$0xf]
    %v99 = vld [vmem:[#allocation5 + $0x7c] sm:$0xf]
    %v100 = vld [vmem:[#allocation5 + $0x80] sm:$0xf]
    %v101 = vld [vmem:[#allocation5 + $0x84] sm:$0xf]
    %v102 = vld [vmem:[#allocation5 + $0x88] sm:$0xf]
    %v103 = vld [vmem:[#allocation5 + $0x8c] sm:$0xf]
    %v104 = vld [vmem:[#allocation5 + $0x90] sm:$0xf]
    %v105 = vld [vmem:[#allocation5 + $0x94] sm:$0xf]
    %v106 = vld [vmem:[#allocation5 + $0x98] sm:$0xf]
    %v107 = vld [vmem:[#allocation5 + $0x9c] sm:$0xf]
    %v108 = vld [vmem:[#allocation5 + $0xa0] sm:$0xf]
    %v109 = vld [vmem:[#allocation5 + $0xa4] sm:$0xf]
    %v110 = vld [vmem:[#allocation5 + $0xa8] sm:$0xf]
    %v111 = vld [vmem:[#allocation5 + $0xac] sm:$0xf]
    %v112 = vld [vmem:[#allocation5 + $0xb0] sm:$0xf]
    %v113 = vld [vmem:[#allocation5 + $0xb4] sm:$0xf]
    %v114 = vld [vmem:[#allocation5 + $0xb8] sm:$0xf]
    %v115 = vld [vmem:[#allocation5 + $0xbc] sm:$0xf]
    %v116 = vld [vmem:[#allocation5 + $0xc0] sm:$0xf]
    %v117 = vld [vmem:[#allocation5 + $0xc4] sm:$0xf]
    %v118 = vld [vmem:[#allocation5 + $0xc8] sm:$0xf]
    %v119 = vld [vmem:[#allocation5 + $0xcc] sm:$0xf]
    %v120 = vld [vmem:[#allocation5 + $0xd0] sm:$0xf]
    %v121 = vld [vmem:[#allocation5 + $0xd4] sm:$0xf]
    %v122 = vld [vmem:[#allocation5 + $0xd8] sm:$0xf]
    %v123 = vld [vmem:[#allocation5 + $0xdc] sm:$0xf]
    %v124 = vld [vmem:[#allocation5 + $0xe0] sm:$0xf]
    %v125 = vld [vmem:[#allocation5 + $0xe4] sm:$0xf]
    %v126 = vld [vmem:[#allocation5 + $0xe8] sm:$0xf]
    %v127 = vld [vmem:[#allocation5 + $0xec] sm:$0xf]
    %v128 = vld [vmem:[#allocation5 + $0xf0] sm:$0xf]
    %v129 = vld [vmem:[#allocation5 + $0xf4] sm:$0xf]
    %v130 = vld [vmem:[#allocation5 + $0xf8] sm:$0xf]
    %v131 = vld [vmem:[#allocation5 + $0xfc] sm:$0xf]
    %v132 = vld [vmem:[#allocation5 + $0x100] sm:$0xf]
    %v133 = vld [vmem:[#allocation5 + $0x104] sm:$0xf]
    %v134 = vld [vmem:[#allocation5 + $0x108] sm:$0xf]
    %v135 = vld [vmem:[#allocation5 + $0x10c] sm:$0xf]
    %v136 = vld [vmem:[#allocation5 + $0x110] sm:$0xf]
    %v137 = vld [vmem:[#allocation5 + $0x114] sm:$0xf]
    %v138 = vld [vmem:[#allocation5 + $0x118] sm:$0xf]
    %v139 = vld [vmem:[#allocation5 + $0x11c] sm:$0xf]
    %v140 = vld [vmem:[#allocation5 + $0x120] sm:$0xf]
    %v141 = vld [vmem:[#allocation5 + $0x124] sm:$0xf]
    %v142 = vld [vmem:[#allocation5 + $0x128] sm:$0xf]
    %v143 = vld [vmem:[#allocation5 + $0x12c] sm:$0xf]
    %v144 = vld [vmem:[#allocation5 + $0x130] sm:$0xf]
    %v145 = vld [vmem:[#allocation5 + $0x134] sm:$0xf]
    %v146 = vld [vmem:[#allocation5 + $0x138] sm:$0xf]
    %v147 = vld [vmem:[#allocation5 + $0x13c] sm:$0xf]
    %v148 = vld [vmem:[#allocation5 + $0x140] sm:$0xf]
    %v149 = vld [vmem:[#allocation5 + $0x144] sm:$0xf]
    %v150 = vld [vmem:[#allocation5 + $0x148] sm:$0xf]
    %v151 = vld [vmem:[#allocation5 + $0x14c] sm:$0xf]
    %v152 = vld [vmem:[#allocation5 + $0x150] sm:$0xf]
    %v153 = vld [vmem:[#allocation5 + $0x154] sm:$0xf]
    %v154 = vld [vmem:[#allocation5 + $0x158] sm:$0xf]
    %v155 = vld [vmem:[#allocation5 + $0x15c] sm:$0xf]
    %v156 = vld [vmem:[#allocation5 + $0x160] sm:$0xf]
    %v157 = vld [vmem:[#allocation5 + $0x164] sm:$0xf]
    %v158 = vld [vmem:[#allocation5 + $0x168] sm:$0xf]
    %v159 = vld [vmem:[#allocation5 + $0x16c] sm:$0xf]
    %v160 = vld [vmem:[#allocation5 + $0x170] sm:$0xf]
    %v161 = vld [vmem:[#allocation5 + $0x174] sm:$0xf]
    %v162 = vld [vmem:[#allocation5 + $0x178] sm:$0xf]
    %v163 = vld [vmem:[#allocation5 + $0x17c] sm:$0xf]
    %v164 = vld [vmem:[#allocation5 + $0x180] sm:$0xf]
    %v165 = vld [vmem:[#allocation5 + $0x184] sm:$0xf]
    %v166 = vld [vmem:[#allocation5 + $0x188] sm:$0xf]
    %v167 = vld [vmem:[#allocation5 + $0x18c] sm:$0xf]
    %v168 = vld [vmem:[#allocation5 + $0x190] sm:$0xf]
    %v169 = vld [vmem:[#allocation5 + $0x194] sm:$0xf]
    %v170 = vld [vmem:[#allocation5 + $0x198] sm:$0xf]
    %v171 = vld [vmem:[#allocation5 + $0x19c] sm:$0xf]
    %v172 = vld [vmem:[#allocation5 + $0x1a0] sm:$0xf]
    %v173 = vld [vmem:[#allocation5 + $0x1a4] sm:$0xf]
    %v174 = vld [vmem:[#allocation5 + $0x1a8] sm:$0xf]
    %v175 = vld [vmem:[#allocation5 + $0x1ac] sm:$0xf]
    %v176 = vld [vmem:[#allocation5 + $0x1b0] sm:$0xf]
    %v177 = vld [vmem:[#allocation5 + $0x1b4] sm:$0xf]
    %v178 = vld [vmem:[#allocation5 + $0x1b8] sm:$0xf]
    %v179 = vld [vmem:[#allocation5 + $0x1bc] sm:$0xf]
    %v180 = vld [vmem:[#allocation5 + $0x1c0] sm:$0xf]
    %v181 = vld [vmem:[#allocation5 + $0x1c4] sm:$0xf]
    %v182 = vld [vmem:[#allocation5 + $0x1c8] sm:$0xf]
    %v183 = vld [vmem:[#allocation5 + $0x1cc] sm:$0xf]
    %v184 = vld [vmem:[#allocation5 + $0x1d0] sm:$0xf]
    %v185 = vld [vmem:[#allocation5 + $0x1d4] sm:$0xf]
    %v186 = vld [vmem:[#allocation5 + $0x1d8] sm:$0xf]
    %v187 = vld [vmem:[#allocation5 + $0x1dc] sm:$0xf]
    %v188 = vld [vmem:[#allocation5 + $0x1e0] sm:$0xf]
    %v189 = vld [vmem:[#allocation5 + $0x1e4] sm:$0xf]
    %v190 = vld [vmem:[#allocation5 + $0x1e8] sm:$0xf]
    %v191 = vld [vmem:[#allocation5 + $0x1ec] sm:$0xf]
    %v192 = vld [vmem:[#allocation5 + $0x1f0] sm:$0xf]
    %v193 = vld [vmem:[#allocation5 + $0x1f4] sm:$0xf]
    %v194 = vld [vmem:[#allocation5 + $0x1f8] sm:$0xf]
    %v195 = vld [vmem:[#allocation5 + $0x1fc] sm:$0xf]
    %v324 = vunpack.c.l.b16 %v68
    %v325 = vunpack.c.l.b16 %v69
    %v326 = vunpack.c.l.b16 %v70
    %v327 = vunpack.c.l.b16 %v71
    %v328 = vunpack.c.l.b16 %v72
    %v329 = vunpack.c.l.b16 %v73
    %v330 = vunpack.c.l.b16 %v74
    %v331 = vunpack.c.l.b16 %v75
    %v332 = vunpack.c.l.b16 %v76
    %v333 = vunpack.c.l.b16 %v77
    %v334 = vunpack.c.l.b16 %v78
    %v335 = vunpack.c.l.b16 %v79
    %v336 = vunpack.c.l.b16 %v80
    %v337 = vunpack.c.l.b16 %v81
    %v338 = vunpack.c.l.b16 %v82
    %v339 = vunpack.c.l.b16 %v83
    %v340 = vunpack.c.l.b16 %v84
    %v341 = vunpack.c.l.b16 %v85
    %v342 = vunpack.c.l.b16 %v86
    %v343 = vunpack.c.l.b16 %v87
    %v344 = vunpack.c.l.b16 %v88
    %v345 = vunpack.c.l.b16 %v89
    %v346 = vunpack.c.l.b16 %v90
    %v347 = vunpack.c.l.b16 %v91
    %v348 = vunpack.c.l.b16 %v92
    %v349 = vunpack.c.l.b16 %v93
    %v350 = vunpack.c.l.b16 %v94
    %v351 = vunpack.c.l.b16 %v95
    %v352 = vunpack.c.l.b16 %v96
    %v353 = vunpack.c.l.b16 %v97
    %v354 = vunpack.c.l.b16 %v98
    %v355 = vunpack.c.l.b16 %v99
    %v356 = vunpack.c.l.b16 %v100
    %v357 = vunpack.c.l.b16 %v101
    %v358 = vunpack.c.l.b16 %v102
    %v359 = vunpack.c.l.b16 %v103
    %v360 = vunpack.c.l.b16 %v104
    %v361 = vunpack.c.l.b16 %v105
    %v362 = vunpack.c.l.b16 %v106
    %v363 = vunpack.c.l.b16 %v107
    %v364 = vunpack.c.l.b16 %v108
    %v365 = vunpack.c.l.b16 %v109
    %v366 = vunpack.c.l.b16 %v110
    %v367 = vunpack.c.l.b16 %v111
    %v368 = vunpack.c.l.b16 %v112
    %v369 = vunpack.c.l.b16 %v113
    %v370 = vunpack.c.l.b16 %v114
    %v371 = vunpack.c.l.b16 %v115
    %v372 = vunpack.c.l.b16 %v116
    %v373 = vunpack.c.l.b16 %v117
    %v374 = vunpack.c.l.b16 %v118
    %v375 = vunpack.c.l.b16 %v119
    %v376 = vunpack.c.l.b16 %v120
    %v377 = vunpack.c.l.b16 %v121
    %v378 = vunpack.c.l.b16 %v122
    %v379 = vunpack.c.l.b16 %v123
    %v380 = vunpack.c.l.b16 %v124
    %v381 = vunpack.c.l.b16 %v125
    %v382 = vunpack.c.l.b16 %v126
    %v383 = vunpack.c.l.b16 %v127
    %v384 = vunpack.c.l.b16 %v128
    %v385 = vunpack.c.l.b16 %v129
    %v386 = vunpack.c.l.b16 %v130
    %v387 = vunpack.c.l.b16 %v131
    %v388 = vunpack.c.l.b16 %v132
    %v389 = vunpack.c.l.b16 %v133
    %v390 = vunpack.c.l.b16 %v134
    %v391 = vunpack.c.l.b16 %v135
    %v392 = vunpack.c.l.b16 %v136
    %v393 = vunpack.c.l.b16 %v137
    %v394 = vunpack.c.l.b16 %v138
    %v395 = vunpack.c.l.b16 %v139
    %v396 = vunpack.c.l.b16 %v140
    %v397 = vunpack.c.l.b16 %v141
    %v398 = vunpack.c.l.b16 %v142
    %v399 = vunpack.c.l.b16 %v143
    %v400 = vunpack.c.l.b16 %v144
    %v401 = vunpack.c.l.b16 %v145
    %v402 = vunpack.c.l.b16 %v146
    %v403 = vunpack.c.l.b16 %v147
    %v404 = vunpack.c.l.b16 %v148
    %v405 = vunpack.c.l.b16 %v149
    %v406 = vunpack.c.l.b16 %v150
    %v407 = vunpack.c.l.b16 %v151
    %v408 = vunpack.c.l.b16 %v152
    %v409 = vunpack.c.l.b16 %v153
    %v410 = vunpack.c.l.b16 %v154
    %v411 = vunpack.c.l.b16 %v155
    %v412 = vunpack.c.l.b16 %v156
    %v413 = vunpack.c.l.b16 %v157
    %v414 = vunpack.c.l.b16 %v158
    %v415 = vunpack.c.l.b16 %v159
    %v416 = vunpack.c.l.b16 %v160
    %v417 = vunpack.c.l.b16 %v161
    %v418 = vunpack.c.l.b16 %v162
    %v419 = vunpack.c.l.b16 %v163
    %v420 = vunpack.c.l.b16 %v164
    %v421 = vunpack.c.l.b16 %v165
    %v422 = vunpack.c.l.b16 %v166
    %v423 = vunpack.c.l.b16 %v167
    %v424 = vunpack.c.l.b16 %v168
    %v425 = vunpack.c.l.b16 %v169
    %v426 = vunpack.c.l.b16 %v170
    %v427 = vunpack.c.l.b16 %v171
    %v428 = vunpack.c.l.b16 %v172
    %v429 = vunpack.c.l.b16 %v173
    %v430 = vunpack.c.l.b16 %v174
    %v431 = vunpack.c.l.b16 %v175
    %v432 = vunpack.c.l.b16 %v176
    %v433 = vunpack.c.l.b16 %v177
    %v434 = vunpack.c.l.b16 %v178
    %v435 = vunpack.c.l.b16 %v179
    %v436 = vunpack.c.l.b16 %v180
    %v437 = vunpack.c.l.b16 %v181
    %v438 = vunpack.c.l.b16 %v182
    %v439 = vunpack.c.l.b16 %v183
    %v440 = vunpack.c.l.b16 %v184
    %v441 = vunpack.c.l.b16 %v185
    %v442 = vunpack.c.l.b16 %v186
    %v443 = vunpack.c.l.b16 %v187
    %v444 = vunpack.c.l.b16 %v188
    %v445 = vunpack.c.l.b16 %v189
    %v446 = vunpack.c.l.b16 %v190
    %v447 = vunpack.c.l.b16 %v191
    %v448 = vunpack.c.l.b16 %v192
    %v449 = vunpack.c.l.b16 %v193
    %v450 = vunpack.c.l.b16 %v194
    %v451 = vunpack.c.l.b16 %v195
    %v452 = vpack.c.b16 %v325, %v324
    %v453 = vpack.c.b16 %v327, %v326
    %v454 = vpack.c.b16 %v329, %v328
    %v455 = vpack.c.b16 %v331, %v330
    %v456 = vpack.c.b16 %v333, %v332
    %v457 = vpack.c.b16 %v335, %v334
    %v458 = vpack.c.b16 %v337, %v336
    %v459 = vpack.c.b16 %v339, %v338
    %v460 = vpack.c.b16 %v341, %v340
    %v461 = vpack.c.b16 %v343, %v342
    %v462 = vpack.c.b16 %v345, %v344
    %v463 = vpack.c.b16 %v347, %v346
    %v464 = vpack.c.b16 %v349, %v348
    %v465 = vpack.c.b16 %v351, %v350
    %v466 = vpack.c.b16 %v353, %v352
    %v467 = vpack.c.b16 %v355, %v354
    %v468 = vpack.c.b16 %v357, %v356
    %v469 = vpack.c.b16 %v359, %v358
    %v470 = vpack.c.b16 %v361, %v360
    %v471 = vpack.c.b16 %v363, %v362
    %v472 = vpack.c.b16 %v365, %v364
    %v473 = vpack.c.b16 %v367, %v366
    %v474 = vpack.c.b16 %v369, %v368
    %v475 = vpack.c.b16 %v371, %v370
    %v476 = vpack.c.b16 %v373, %v372
    %v477 = vpack.c.b16 %v375, %v374
    %v478 = vpack.c.b16 %v377, %v376
    %v479 = vpack.c.b16 %v379, %v378
    %v480 = vpack.c.b16 %v381, %v380
    %v481 = vpack.c.b16 %v383, %v382
    %v482 = vpack.c.b16 %v385, %v384
    %v483 = vpack.c.b16 %v387, %v386
    %v484 = vpack.c.b16 %v389, %v388
    %v485 = vpack.c.b16 %v391, %v390
    %v486 = vpack.c.b16 %v393, %v392
    %v487 = vpack.c.b16 %v395, %v394
    %v488 = vpack.c.b16 %v397, %v396
    %v489 = vpack.c.b16 %v399, %v398
    %v490 = vpack.c.b16 %v401, %v400
    %v491 = vpack.c.b16 %v403, %v402
    %v492 = vpack.c.b16 %v405, %v404
    %v493 = vpack.c.b16 %v407, %v406
    %v494 = vpack.c.b16 %v409, %v408
    %v495 = vpack.c.b16 %v411, %v410
    %v496 = vpack.c.b16 %v413, %v412
    %v497 = vpack.c.b16 %v415, %v414
    %v498 = vpack.c.b16 %v417, %v416
    %v499 = vpack.c.b16 %v419, %v418
    %v500 = vpack.c.b16 %v421, %v420
    %v501 = vpack.c.b16 %v423, %v422
    %v502 = vpack.c.b16 %v425, %v424
    %v503 = vpack.c.b16 %v427, %v426
    %v504 = vpack.c.b16 %v429, %v428
    %v505 = vpack.c.b16 %v431, %v430
    %v506 = vpack.c.b16 %v433, %v432
    %v507 = vpack.c.b16 %v435, %v434
    %v508 = vpack.c.b16 %v437, %v436
    %v509 = vpack.c.b16 %v439, %v438
    %v510 = vpack.c.b16 %v441, %v440
    %v511 = vpack.c.b16 %v443, %v442
    %v512 = vpack.c.b16 %v445, %v444
    %v513 = vpack.c.b16 %v447, %v446
    %v514 = vpack.c.b16 %v449, %v448
    %v515 = vpack.c.b16 %v451, %v450
    %580 = vmatprep.subr.bf16.mxu0 0
    %581 = vmatpush1.bf16.msra.mxu0 %v459
    %582 = vmatprep.subr.bf16.mxu0 0
    %583 = vmatpush1.bf16.msra.mxu0 %v458
    %584 = vmatprep.subr.bf16.mxu0 0
    %585 = vmatpush1.bf16.msra.mxu0 %v457
    %586 = vmatprep.subr.bf16.mxu0 0
    %587 = vmatpush1.bf16.msra.mxu0 %v456
    %588 = vmatprep.subr.bf16.mxu0 0
    %589 = vmatpush1.bf16.msra.mxu0 %v455
    %590 = vmatprep.subr.bf16.mxu0 0
    %591 = vmatpush1.bf16.msra.mxu0 %v454
    %592 = vmatprep.subr.bf16.mxu0 0
    %593 = vmatpush1.bf16.msra.mxu0 %v453
    %594 = vmatprep.subr.bf16.mxu0 0
    %595 = vmatpush1.bf16.msra.mxu0 %v452
    %596 = vmatprep.subr.bf16.mxu0 0
    %597 = vmatpush2.bf16.msra.mxu0 %v467
    %598 = vmatprep.subr.bf16.mxu0 0
    %599 = vmatpush2.bf16.msra.mxu0 %v466
    %600 = vmatprep.subr.bf16.mxu0 0
    %601 = vmatpush2.bf16.msra.mxu0 %v465
    %602 = vmatprep.subr.bf16.mxu0 0
    %603 = vmatpush2.bf16.msra.mxu0 %v464
    %604 = vmatprep.subr.bf16.mxu0 0
    %605 = vmatpush2.bf16.msra.mxu0 %v463
    %606 = vmatprep.subr.bf16.mxu0 0
    %607 = vmatpush2.bf16.msra.mxu0 %v462
    %608 = vmatprep.subr.bf16.mxu0 0
    %609 = vmatpush2.bf16.msra.mxu0 %v461
    %610 = vmatprep.subr.bf16.mxu0 0
    %611 = vmatpush2.bf16.msra.mxu0 %v460
    %612 = vmatprep.mubr.bf16.mxu0 %v61
    %613 = vmatmul.mubr.bf16.gmra.mxu0 %v60
    %v614 = vpop.f32.mrf.mxu0
    %v615 = vadd.f32 0.0, %v614
    %v616 = vpop.f32.mrf.mxu0
    %v617 = vpop.f32.mrf.mxu0
    %v618 = vpop.f32.mrf.mxu0
    %619 = vdwg.mxu0
    %620 = vmatprep.subr.bf16.mxu0 0
    %621 = vmatpush1.bf16.msra.mxu0 %v475
    %622 = vmatprep.subr.bf16.mxu0 0
    %623 = vmatpush1.bf16.msra.mxu0 %v474
    %624 = vmatprep.subr.bf16.mxu0 0
    %625 = vmatpush1.bf16.msra.mxu0 %v473
    %626 = vmatprep.subr.bf16.mxu0 0
    %627 = vmatpush1.bf16.msra.mxu0 %v472
    %628 = vmatprep.subr.bf16.mxu0 0
    %629 = vmatpush1.bf16.msra.mxu0 %v471
    %630 = vmatprep.subr.bf16.mxu0 0
    %631 = vmatpush1.bf16.msra.mxu0 %v470
    %632 = vmatprep.subr.bf16.mxu0 0
    %633 = vmatpush1.bf16.msra.mxu0 %v469
    %634 = vmatprep.subr.bf16.mxu0 0
    %635 = vmatpush1.bf16.msra.mxu0 %v468
    %636 = vmatprep.subr.bf16.mxu0 0
    %637 = vmatpush2.bf16.msra.mxu0 %v483
    %638 = vmatprep.subr.bf16.mxu0 0
    %639 = vmatpush2.bf16.msra.mxu0 %v482
    %640 = vmatprep.subr.bf16.mxu0 0
    %641 = vmatpush2.bf16.msra.mxu0 %v481
    %642 = vmatprep.subr.bf16.mxu0 0
    %643 = vmatpush2.bf16.msra.mxu0 %v480
    %644 = vmatprep.subr.bf16.mxu0 0
    %645 = vmatpush2.bf16.msra.mxu0 %v479
    %646 = vmatprep.subr.bf16.mxu0 0
    %647 = vmatpush2.bf16.msra.mxu0 %v478
    %648 = vmatprep.subr.bf16.mxu0 0
    %649 = vmatpush2.bf16.msra.mxu0 %v477
    %650 = vmatprep.subr.bf16.mxu0 0
    %651 = vmatpush2.bf16.msra.mxu0 %v476
    %652 = vmatprep.mubr.bf16.mxu0 %v63
    %653 = vmatmul.mubr.bf16.gmra.mxu0 %v62
    %v654 = vpop.f32.mrf.mxu0
    %v655 = vadd.f32 %v615, %v654
    %v656 = vpop.f32.mrf.mxu0
    %v657 = vpop.f32.mrf.mxu0
    %v658 = vpop.f32.mrf.mxu0
    %659 = vdwg.mxu0
    %660 = vmatprep.subr.bf16.mxu0 0
    %661 = vmatpush1.bf16.msra.mxu0 %v491
    %662 = vmatprep.subr.bf16.mxu0 0
    %663 = vmatpush1.bf16.msra.mxu0 %v490
    %664 = vmatprep.subr.bf16.mxu0 0
    %665 = vmatpush1.bf16.msra.mxu0 %v489
    %666 = vmatprep.subr.bf16.mxu0 0
    %667 = vmatpush1.bf16.msra.mxu0 %v488
    %668 = vmatprep.subr.bf16.mxu0 0
    %669 = vmatpush1.bf16.msra.mxu0 %v487
    %670 = vmatprep.subr.bf16.mxu0 0
    %671 = vmatpush1.bf16.msra.mxu0 %v486
    %672 = vmatprep.subr.bf16.mxu0 0
    %673 = vmatpush1.bf16.msra.mxu0 %v485
    %674 = vmatprep.subr.bf16.mxu0 0
    %675 = vmatpush1.bf16.msra.mxu0 %v484
    %676 = vmatprep.subr.bf16.mxu0 0
    %677 = vmatpush2.bf16.msra.mxu0 %v499
    %678 = vmatprep.subr.bf16.mxu0 0
    %679 = vmatpush2.bf16.msra.mxu0 %v498
    %680 = vmatprep.subr.bf16.mxu0 0
    %681 = vmatpush2.bf16.msra.mxu0 %v497
    %682 = vmatprep.subr.bf16.mxu0 0
    %683 = vmatpush2.bf16.msra.mxu0 %v496
    %684 = vmatprep.subr.bf16.mxu0 0
    %685 = vmatpush2.bf16.msra.mxu0 %v495
    %686 = vmatprep.subr.bf16.mxu0 0
    %687 = vmatpush2.bf16.msra.mxu0 %v494
    %688 = vmatprep.subr.bf16.mxu0 0
    %689 = vmatpush2.bf16.msra.mxu0 %v493
    %690 = vmatprep.subr.bf16.mxu0 0
    %691 = vmatpush2.bf16.msra.mxu0 %v492
    %692 = vmatprep.mubr.bf16.mxu0 %v65
    %693 = vmatmul.mubr.bf16.gmra.mxu0 %v64
    %v694 = vpop.f32.mrf.mxu0
    %v695 = vadd.f32 %v655, %v694
    %v696 = vpop.f32.mrf.mxu0
    %v697 = vpop.f32.mrf.mxu0
    %v698 = vpop.f32.mrf.mxu0
    %699 = vdwg.mxu0
    %700 = vmatprep.subr.bf16.mxu0 0
    %701 = vmatpush1.bf16.msra.mxu0 %v507
    %702 = vmatprep.subr.bf16.mxu0 0
    %703 = vmatpush1.bf16.msra.mxu0 %v506
    %704 = vmatprep.subr.bf16.mxu0 0
    %705 = vmatpush1.bf16.msra.mxu0 %v505
    %706 = vmatprep.subr.bf16.mxu0 0
    %707 = vmatpush1.bf16.msra.mxu0 %v504
    %708 = vmatprep.subr.bf16.mxu0 0
    %709 = vmatpush1.bf16.msra.mxu0 %v503
    %710 = vmatprep.subr.bf16.mxu0 0
    %711 = vmatpush1.bf16.msra.mxu0 %v502
    %712 = vmatprep.subr.bf16.mxu0 0
    %713 = vmatpush1.bf16.msra.mxu0 %v501
    %714 = vmatprep.subr.bf16.mxu0 0
    %715 = vmatpush1.bf16.msra.mxu0 %v500
    %716 = vmatprep.subr.bf16.mxu0 0
    %717 = vmatpush2.bf16.msra.mxu0 %v515
    %718 = vmatprep.subr.bf16.mxu0 0
    %719 = vmatpush2.bf16.msra.mxu0 %v514
    %720 = vmatprep.subr.bf16.mxu0 0
    %721 = vmatpush2.bf16.msra.mxu0 %v513
    %722 = vmatprep.subr.bf16.mxu0 0
    %723 = vmatpush2.bf16.msra.mxu0 %v512
    %724 = vmatprep.subr.bf16.mxu0 0
    %725 = vmatpush2.bf16.msra.mxu0 %v511
    %726 = vmatprep.subr.bf16.mxu0 0
    %727 = vmatpush2.bf16.msra.mxu0 %v510
    %728 = vmatprep.subr.bf16.mxu0 0
    %729 = vmatpush2.bf16.msra.mxu0 %v509
    %730 = vmatprep.subr.bf16.mxu0 0
    %731 = vmatpush2.bf16.msra.mxu0 %v508
    %732 = vmatprep.mubr.bf16.mxu0 %v67
    %733 = vmatmul.mubr.bf16.gmra.mxu0 %v66
    %v734 = vpop.f32.mrf.mxu0
    %v735 = vadd.f32 %v695, %v734
    %v736 = vpop.f32.mrf.mxu0
    %v737 = vpop.f32.mrf.mxu0
    %v738 = vpop.f32.mrf.mxu0
    %739 = vdwg.mxu0
    %v740 = vadd.f32 %v51, %v735
    %741 = vst [vmem:[#allocation2] sm:$0xff] %v740
    // Predicated region
    $region30: #{tpu_custom_call.1} parent=1 // pred_check
      %p742 = pneg %p46
    $region31: #{tpu_custom_call.1} parent=1 // pred_check_branch
      %744 = sbr.rel (%p742) target = $region33
    $region32: #{tpu_custom_call.1} parent=1 // pred_region
      %v745 = vld [vmem:[#allocation2] sm:$0xff]
      %v746 = vld [vmem:[%s2] sm:$0x1]
      %v748 = vlaneseq
      %v749 = vshrl.u32 %v748, 7
      %v750 = vsub.s32 0, %v749
      %v751 = vrot.slane %v746, %v750
      %v753 = vadd.f32 %v745, %v751
      %v754 = vlaneseq
      %v755 = vand.u32 %v754, 127
      %vm756 = vcmp.lt.s32.totalorder %v755, 10
      %v757 = vsel %vm756, %v753, -inf
      %758 = vmax.xlane.f32.xlu0 %v757
      %v759 = vpop.xlane.xlu0 %758
      %vm760 = vcmp.eq.f32.partialorder %v757, %v759
      %v761 = vsel %vm760, %v755, 128
      %v762 = vand.u32 %v761, 65535
      %v763 = vshra.s32 %v761, 16
      %v764 = vcvt.s32.f32 %v762
      %v765 = vcvt.s32.f32 %v763
      %766 = vmin.xlane.f32.xlu0 %v765
      %v767 = vpop.xlane.xlu0 %766
      %vm768 = vcmp.eq.f32.partialorder %v765, %v767
      %v769 = vsel %vm768, %v764, inf
      %770 = vmin.xlane.f32.xlu0 %v769
      %v771 = vpop.xlane.xlu0 %770
      %v772 = vcvt.f32.s32 %v771
      %v773 = vcvt.f32.s32 %v767
      %v774 = vshll.u32 %v773, 16
      %v775 = vadd.s32 %v774, %v772
      %vm776 = vcmask 7168
      %777 = vst.msk [vmem:[%s4] sm:$0xff] %vm776, %v775
      %v778 = vld [vmem:[%s3] sm:$0xff]
      %vm779 = vcmp.eq.s32.totalorder %v775, %v778
      %v780 = vsel %vm779, 1, 0
      %v781 = vcvt.s32.f32 %v780
      %782 = vst.msk [vmem:[%s5] sm:$0xff] %vm776, %v781
    $region33: #{tpu_custom_call.1} parent=1 // pred_fallthru
      _
    // Predicated region
    $region34: #{tpu_custom_call.1} parent=1 // pred_check
      _
    $region35: #{tpu_custom_call.1} parent=1 // pred_check_branch
      %784 = sbr.rel (0) target = $region37
    $region36: #{tpu_custom_call.1} parent=1 // pred_region
      _
    $region37: #{tpu_custom_call.1} parent=1 // pred_fallthru
      _
    // Predicated region
    $region38: #{tpu_custom_call.1} parent=1 // pred_check
      _
    $region39: #{tpu_custom_call.1} parent=1 // pred_check_branch
      %786 = sbr.rel (0) target = $region41
    $region40: #{tpu_custom_call.1} parent=1 // pred_region
      _
    $region41: #{tpu_custom_call.1} parent=1 // pred_fallthru
      _
    // Predicated region
    $region42: #{tpu_custom_call.1} parent=1 // pred_check
      _
    $region43: #{tpu_custom_call.1} parent=1 // pred_check_branch
      %788 = sbr.rel (0) target = $region45
    $region44: #{tpu_custom_call.1} parent=1 // pred_region
      _
    $region45: #{tpu_custom_call.1} parent=1 // pred_fallthru
      _
    // Predicated region
    $region46: #{tpu_custom_call.1} parent=1 // pred_check
      _
    $region47: #{tpu_custom_call.1} parent=1 // pred_check_branch
      %790 = sbr.rel (0) target = $region49
    $region48: #{tpu_custom_call.1} parent=1 // pred_region
      _
    $region49: #{tpu_custom_call.1} parent=1 // pred_fallthru
      _
    %791 = vsyncpa [#allocation4], 1
    %792 = vsyncpa [#allocation6], 1

</llo_original>
